<compile_context>
chip_gen: v7x
topology: tpu7x:2x2x1
jax: 0.10.0
libtpu: 0.0.40
codegen_flags: <defaults>
</compile_context>

<pallas_src>
import functools
import math

import jax
import jax.numpy as jnp
from jax.experimental import pallas as pl
from jax.experimental.pallas import tpu as pltpu


# TODO(synk): set MATMUL_DTYPE = jnp.bfloat16 on v5e/v6e (and fp8 weights on v7x)
# for ~2x MXU rate and half the HBM traffic; kept f32 to match the torch
# reference numerics exactly.
MATMUL_DTYPE = jnp.float32

# Tile budget below keeps live VMEM well under 32 MiB, so it also fits v7x's
# 64 MiB physical / 32 MiB scoped default with double-buffering headroom.
_VMEM_LIMIT = 32 * 1024 * 1024


def _tile(dim, target, align):
    """Largest t <= target with dim % t == 0 and t % align == 0, else full dim."""
    if dim <= target:
        return dim
    t = (target // align) * align
    while t >= align:
        if dim % t == 0:
            return t
        t -= align
    return dim


# ----------------------------- Pallas kernels -----------------------------

def _linear_kernel(x_ref, w_ref, b_ref, o_ref, acc_ref, *, act):
    """Tiled y = act(x @ w + b); K-reduction accumulated in VMEM scratch."""
    k = pl.program_id(2)

    @pl.when(k == 0)
    def _():
        acc_ref[...] = jnp.zeros_like(acc_ref)

    acc_ref[...] += jnp.dot(x_ref[...].astype(MATMUL_DTYPE),
                            w_ref[...].astype(MATMUL_DTYPE),
                            preferred_element_type=jnp.float32)

    @pl.when(k == pl.num_programs(2) - 1)
    def _():
        y = acc_ref[...] + b_ref[...]
        if act == "gelu":
            # TODO(synk): HF BERT default is exact erf-GELU; tanh approximation used here.
            y = jax.nn.gelu(y, approximate=True)
        elif act == "tanh":
            y = jnp.tanh(y)
        o_ref[...] = y.astype(o_ref.dtype)


def linear(x, w, b, act="none"):
    M, K = x.shape
    _, N = w.shape
    tm = _tile(M, 256, 8)
    tk = _tile(K, 512, 128)
    tn = _tile(N, 512, 128)
    grid = (M // tm, N // tn, K // tk)
    return pl.pallas_call(
        functools.partial(_linear_kernel, act=act),
        out_shape=jax.ShapeDtypeStruct((M, N), x.dtype),
        grid=grid,
        in_specs=[
            pl.BlockSpec((tm, tk), lambda i, j, k: (i, k)),
            pl.BlockSpec((tk, tn), lambda i, j, k: (k, j)),
            pl.BlockSpec((1, tn), lambda i, j, k: (0, j)),
        ],
        out_specs=pl.BlockSpec((tm, tn), lambda i, j, k: (i, j)),
        scratch_shapes=[pltpu.VMEM((tm, tn), jnp.float32)],
        compiler_params=pltpu.CompilerParams(
            dimension_semantics=("parallel", "parallel", "arbitrary"),
            vmem_limit_bytes=_VMEM_LIMIT),
        cost_estimate=pl.CostEstimate(
            flops=2 * M * N * K,
            transcendentals=M * N if act in ("gelu", "tanh") else 0,
            bytes_accessed=4 * (M * K + K * N + M * N)),
    )(x, w, b.reshape(1, N))


def _linear_res_ln_kernel(x_ref, w_ref, b_ref, r_ref, g_ref, bb_ref, o_ref,
                          acc_ref, *, eps):
    """Tiled y = LayerNorm(x @ w + b + residual); LN fused into last-K epilogue."""
    k = pl.program_id(1)

    @pl.when(k == 0)
    def _():
        acc_ref[...] = jnp.zeros_like(acc_ref)

    acc_ref[...] += jnp.dot(x_ref[...].astype(MATMUL_DTYPE),
                            w_ref[...].astype(MATMUL_DTYPE),
                            preferred_element_type=jnp.float32)

    @pl.when(k == pl.num_programs(1) - 1)
    def _():
        y = acc_ref[...] + b_ref[...] + r_ref[...].astype(jnp.float32)
        u = jnp.mean(y, axis=-1, keepdims=True)
        yc = y - u
        s = jnp.mean(yc * yc, axis=-1, keepdims=True)
        out = g_ref[...] * (yc * jax.lax.rsqrt(s + eps)) + bb_ref[...]
        o_ref[...] = out.astype(o_ref.dtype)


def linear_residual_layernorm(x, w, b, res, gamma, beta, eps=1e-12):
    M, K = x.shape
    _, N = w.shape
    tm = _tile(M, 256, 8)
    tk = _tile(K, 512, 128)
    grid = (M // tm, K // tk)      # N kept whole: LN reduces over the feature dim
    return pl.pallas_call(
        functools.partial(_linear_res_ln_kernel, eps=eps),
        out_shape=jax.ShapeDtypeStruct((M, N), x.dtype),
        grid=grid,
        in_specs=[
            pl.BlockSpec((tm, tk), lambda i, k: (i, k)),
            pl.BlockSpec((tk, N), lambda i, k: (k, 0)),
            pl.BlockSpec((1, N), lambda i, k: (0, 0)),
            pl.BlockSpec((tm, N), lambda i, k: (i, 0)),
            pl.BlockSpec((1, N), lambda i, k: (0, 0)),
            pl.BlockSpec((1, N), lambda i, k: (0, 0)),
        ],
        out_specs=pl.BlockSpec((tm, N), lambda i, k: (i, 0)),
        scratch_shapes=[pltpu.VMEM((tm, N), jnp.float32)],
        compiler_params=pltpu.CompilerParams(
            dimension_semantics=("parallel", "arbitrary"),
            vmem_limit_bytes=_VMEM_LIMIT),
        cost_estimate=pl.CostEstimate(
            flops=2 * M * N * K,
            transcendentals=0,
            bytes_accessed=4 * (M * K + K * N + 3 * M * N)),
    )(x, w, b.reshape(1, N), res, gamma.reshape(1, N), beta.reshape(1, N))


def _ln_kernel(x_ref, g_ref, b_ref, o_ref, *, eps):
    """BertLayerNorm (TF style: eps inside the sqrt)."""
    x = x_ref[...].astype(jnp.float32)
    u = jnp.mean(x, axis=-1, keepdims=True)
    xc = x - u
    s = jnp.mean(xc * xc, axis=-1, keepdims=True)
    o_ref[...] = (g_ref[...] * (xc * jax.lax.rsqrt(s + eps))
                  + b_ref[...]).astype(o_ref.dtype)


def layernorm(x, gamma, beta, eps=1e-12):
    M, H = x.shape
    tm = _tile(M, 512, 8)
    return pl.pallas_call(
        functools.partial(_ln_kernel, eps=eps),
        out_shape=jax.ShapeDtypeStruct((M, H), x.dtype),
        grid=(M // tm,),
        in_specs=[
            pl.BlockSpec((tm, H), lambda i: (i, 0)),
            pl.BlockSpec((1, H), lambda i: (0, 0)),
            pl.BlockSpec((1, H), lambda i: (0, 0)),
        ],
        out_specs=pl.BlockSpec((tm, H), lambda i: (i, 0)),
        compiler_params=pltpu.CompilerParams(
            dimension_semantics=("parallel",),
            vmem_limit_bytes=_VMEM_LIMIT),
    )(x, gamma.reshape(1, H), beta.reshape(1, H))


def _attn_kernel(q_ref, k_ref, v_ref, m_ref, o_ref, *, scale, hpb, dh):
    """One (batch, head-group) tile: softmax(q k^T / sqrt(d) + bias) v, hpb heads.

    Blocks are (1, S, hpb*Dh) slices of the (B, S, H) activation slabs, so no
    XLA-side head-split/merge transposes are needed.
    """
    bias = m_ref[0]                                   # (1, S) additive mask bias
    qb = q_ref[0].astype(jnp.float32) * scale         # fold 1/sqrt(Dh) into q
    kb = k_ref[0].astype(jnp.float32)
    vb = v_ref[0].astype(jnp.float32)
    outs = []
    for h in range(hpb):
        sl = slice(h * dh, (h + 1) * dh)
        q, k, v = qb[:, sl], kb[:, sl], vb[:, sl]     # (S, Dh)
        s = jax.lax.dot_general(q.astype(MATMUL_DTYPE), k.astype(MATMUL_DTYPE),
                                (((1,), (1,)), ((), ())),
                                preferred_element_type=jnp.float32) + bias
        mmax = jnp.max(s, axis=-1, keepdims=True)
        p = jnp.exp(s - mmax)
        p = p * pl.reciprocal(jnp.sum(p, axis=-1, keepdims=True), approx=True)
        outs.append(jnp.dot(p.astype(MATMUL_DTYPE), v.astype(MATMUL_DTYPE),
                            preferred_element_type=jnp.float32))
    o_ref[0] = jnp.concatenate(outs, axis=-1).astype(o_ref.dtype)


def mha_attention(q, k, v, mask_bias, n_heads, d_head, heads_per_block):
    # TODO(synk): full-S score tiles; fine for BERT S<=512, would need flash-style
    # KV tiling for much longer sequences.
    B, S, H = q.shape
    scale = 1.0 / math.sqrt(d_head)
    hpb = heads_per_block
    dblk = hpb * d_head
    grid = (B, n_heads // hpb)
    qkv_spec = pl.BlockSpec((1, S, dblk), lambda b, g: (b, 0, g))
    return pl.pallas_call(
        functools.partial(_attn_kernel, scale=scale, hpb=hpb, dh=d_head),
        out_shape=jax.ShapeDtypeStruct((B, S, H), q.dtype),
        grid=grid,
        in_specs=[
            qkv_spec, qkv_spec, qkv_spec,
            pl.BlockSpec((1, 1, S), lambda b, g: (b, 0, 0)),
        ],
        out_specs=pl.BlockSpec((1, S, dblk), lambda b, g: (b, 0, g)),
        compiler_params=pltpu.CompilerParams(
            dimension_semantics=("parallel", "parallel"),
            vmem_limit_bytes=_VMEM_LIMIT),
        cost_estimate=pl.CostEstimate(
            flops=4 * B * n_heads * S * S * d_head,
            transcendentals=B * n_heads * S * S,
            bytes_accessed=4 * (4 * B * S * H + B * S)),
    )(q, k, v, mask_bias)


# --------------------------- parameter init (synthetic) ---------------------------

def init_params(key, cfg):
    """Deterministic init matching init_bert_weights: N(0, 0.02) weights, zero bias,
    LayerNorm weight=1 / bias=0. QKV weights are stored fused as (H, 3H)."""
    std = 0.02
    H, I = cfg["hidden"], cfg["intermediate"]
    n_keys = 4 + cfg["layers"] * 4
    keys = iter(jax.random.split(key, n_keys))

    def nrm(shape):
        return std * jax.random.normal(next(keys), shape, dtype=jnp.float32)

    params = {
        "word_emb": nrm((cfg["vocab"], H)),
        "pos_emb": nrm((cfg["max_pos"], H)),
        "type_emb": nrm((cfg["type_vocab"], H)),
        "emb_ln_g": jnp.ones((H,), jnp.float32),
        "emb_ln_b": jnp.zeros((H,), jnp.float32),
        "pool_w": nrm((H, H)),
        "pool_b": jnp.zeros((H,), jnp.float32),
        "layers": [],
    }
    for _ in range(cfg["layers"]):
        layer = {
            "qkv_w": nrm((H, 3 * H)), "qkv_b": jnp.zeros((3 * H,), jnp.float32),
            "o_w": nrm((H, H)), "o_b": jnp.zeros((H,), jnp.float32),
            "ln1_g": jnp.ones((H,), jnp.float32), "ln1_b": jnp.zeros((H,), jnp.float32),
            "i_w": nrm((H, I)), "i_b": jnp.zeros((I,), jnp.float32),
            "f_w": nrm((I, H)), "f_b": jnp.zeros((H,), jnp.float32),
            "ln2_g": jnp.ones((H,), jnp.float32), "ln2_b": jnp.zeros((H,), jnp.float32),
        }
        params["layers"].append(layer)
    return params


# ------------------------------- forward pass -------------------------------

def bert_for_sequence_encoder(params, input_ids, attention_mask, cfg):
    B, S = input_ids.shape
    H = cfg["hidden"]
    nH = cfg["heads"]
    Dh = H // nH
    M = B * S

    # Embedding gathers are glue (plain JAX); LayerNorm runs in a Pallas kernel.
    we = params["word_emb"][input_ids]                      # (B, S, H)
    pe = params["pos_emb"][jnp.arange(S)][None, :, :]       # (1, S, H)
    te = params["type_emb"][0][None, None, :]               # (1, 1, H), token_type_ids==0
    emb = (we + pe + te).reshape(M, H)
    h = layernorm(emb, params["emb_ln_g"], params["emb_ln_b"])

    # Extended attention mask: (1 - mask) * -10000, broadcast over query rows.
    mask_bias = ((1.0 - attention_mask.astype(jnp.float32)) * -10000.0).reshape(B, 1, S)

    # Heads per attention block: lane-dense (multiple of 128) when possible,
    # otherwise process all heads of a batch row (block last dim == H).
    hpb = nH
    for g in range(1, nH + 1):
        if nH % g == 0 and (g * Dh) % 128 == 0:
            hpb = g
            break

    for layer in params["layers"]:
        qkv = linear(h, layer["qkv_w"], layer["qkv_b"])     # fused QKV: (M, 3H)
        q = qkv[:, :H].reshape(B, S, H)
        k = qkv[:, H:2 * H].reshape(B, S, H)
        v = qkv[:, 2 * H:].reshape(B, S, H)
        ctx = mha_attention(q, k, v, mask_bias, nH, Dh, hpb)  # (B, S, H)
        ctx = ctx.reshape(M, H)
        # attention output projection with fused residual-add + LayerNorm
        h = linear_residual_layernorm(ctx, layer["o_w"], layer["o_b"], h,
                                      layer["ln1_g"], layer["ln1_b"])
        inter = linear(h, layer["i_w"], layer["i_b"], act="gelu")
        # FFN down projection with fused residual-add + LayerNorm
        h = linear_residual_layernorm(inter, layer["f_w"], layer["f_b"], h,
                                      layer["ln2_g"], layer["ln2_b"])

    last_hidden = h.reshape(B, S, H)
    cls = last_hidden[:, 0, :]                               # (B, H)
    pooled = linear(cls, params["pool_w"], params["pool_b"], act="tanh")

    # TODO(synk): nn.Dropout(p=0.1) is identity at inference (module runs under
    # torch.no_grad for encoding); training-mode dropout is not replicated.
    return last_hidden, pooled


# ------------------------------------ main ------------------------------------

if __name__ == "__main__":
    cfg = dict(vocab=100, hidden=32, heads=2, intermediate=64,
               layers=2, max_pos=64, type_vocab=2)
    B, S = 2, 8

    key = jax.random.PRNGKey(0)
    k_param, k_ids = jax.random.split(key)
    params = init_params(k_param, cfg)

    input_ids = jax.random.randint(k_ids, (B, S), 0, cfg["vocab"], dtype=jnp.int32)
    # batch 0 fully attended; batch 1 has the last 2 tokens padded out
    positions = jnp.arange(S)[None, :]
    attention_mask = jnp.where((jnp.arange(B)[:, None] == 1) & (positions >= S - 2),
                               0, 1).astype(jnp.int32)

    last_hidden, pooled = bert_for_sequence_encoder(params, input_ids, attention_mask, cfg)
    jax.block_until_ready((last_hidden, pooled))

    assert last_hidden.shape == (B, S, cfg["hidden"])
    assert pooled.shape == (B, cfg["hidden"])
    assert bool(jnp.all(jnp.isfinite(last_hidden))) and bool(jnp.all(jnp.isfinite(pooled)))
    print("KERNEL_OK")
</pallas_src>

<mosaic_0001>
module attributes {stable_mosaic.version = 11 : i64} {
  func.func @_ln_kernel(%arg0: i32, %arg1: memref<16x32xf32, #tpu.memory_space<vmem>>, %arg2: memref<1x32xf32, #tpu.memory_space<vmem>>, %arg3: memref<1x32xf32, #tpu.memory_space<vmem>>, %arg4: memref<16x32xf32, #tpu.memory_space<vmem>>) attributes {dimension_semantics = [#tpu.dimension_semantics<parallel>], iteration_bounds = array<i64: 1>, scalar_prefetch = 0 : i64, scratch_operands = 0 : i64, tpu.core_type = #tpu.core_type<tc>, window_params = [{transform_indices = @transform_0, window_bounds = array<i64: 16, 32>}, {pipeline_mode = #tpu.pipeline_mode<synchronous>, transform_indices = @transform_1, window_bounds = array<i64: 1, 32>}, {pipeline_mode = #tpu.pipeline_mode<synchronous>, transform_indices = @transform_2, window_bounds = array<i64: 1, 32>}, {transform_indices = @transform_3, window_bounds = array<i64: 16, 32>}]} {
    %c0 = arith.constant 0 : index
    %c0_0 = arith.constant 0 : index
    %0 = vector.load %arg1[%c0, %c0_0] : memref<16x32xf32, #tpu.memory_space<vmem>>, vector<16x32xf32>
    %cst = arith.constant dense<0.000000e+00> : vector<16xf32>
    %1 = vector.multi_reduction <add>, %0, %cst [1] : vector<16x32xf32> to vector<16xf32>
    %2 = vector.shape_cast %1 : vector<16xf32> to vector<16x1xf32>
    %cst_1 = arith.constant 3.200000e+01 : f32
    %3 = vector.broadcast %cst_1 : f32 to vector<16x1xf32>
    %4 = arith.divf %2, %3 : vector<16x1xf32>
    %5 = vector.broadcast %4 : vector<16x1xf32> to vector<16x32xf32>
    %6 = arith.subf %0, %5 : vector<16x32xf32>
    %7 = arith.mulf %6, %6 : vector<16x32xf32>
    %cst_2 = arith.constant dense<0.000000e+00> : vector<16xf32>
    %8 = vector.multi_reduction <add>, %7, %cst_2 [1] : vector<16x32xf32> to vector<16xf32>
    %9 = vector.shape_cast %8 : vector<16xf32> to vector<16x1xf32>
    %cst_3 = arith.constant 3.200000e+01 : f32
    %10 = vector.broadcast %cst_3 : f32 to vector<16x1xf32>
    %11 = arith.divf %9, %10 : vector<16x1xf32>
    %c0_4 = arith.constant 0 : index
    %c0_5 = arith.constant 0 : index
    %12 = vector.load %arg2[%c0_4, %c0_5] : memref<1x32xf32, #tpu.memory_space<vmem>>, vector<1x32xf32>
    %cst_6 = arith.constant 9.99999996E-13 : f32
    %13 = vector.broadcast %cst_6 : f32 to vector<16x1xf32>
    %14 = arith.addf %11, %13 : vector<16x1xf32>
    %15 = math.rsqrt %14 : vector<16x1xf32>
    %16 = vector.broadcast %15 : vector<16x1xf32> to vector<16x32xf32>
    %17 = arith.mulf %6, %16 : vector<16x32xf32>
    %18 = vector.broadcast %12 : vector<1x32xf32> to vector<16x32xf32>
    %19 = arith.mulf %18, %17 : vector<16x32xf32>
    %c0_7 = arith.constant 0 : index
    %c0_8 = arith.constant 0 : index
    %20 = vector.load %arg3[%c0_7, %c0_8] : memref<1x32xf32, #tpu.memory_space<vmem>>, vector<1x32xf32>
    %21 = vector.broadcast %20 : vector<1x32xf32> to vector<16x32xf32>
    %22 = arith.addf %19, %21 : vector<16x32xf32>
    %c0_9 = arith.constant 0 : index
    %c0_10 = arith.constant 0 : index
    %23 = vector.load %arg4[%c0_9, %c0_10] : memref<16x32xf32, #tpu.memory_space<vmem>>, vector<16x32xf32>
    tpu.vector_store %arg4[%c0_9, %c0_10], %22 {strides = array<i32>} : memref<16x32xf32, #tpu.memory_space<vmem>>, vector<16x32xf32>,
    return
  }
  func.func @transform_0(%arg0: i32) -> (i32, i32) {
    %c0_i32 = arith.constant 0 : i32
    %c0_i32_0 = arith.constant 0 : i32
    return %arg0, %c0_i32 : i32, i32
  }
  func.func @transform_1(%arg0: i32) -> (i32, i32) {
    %c0_i32 = arith.constant 0 : i32
    %c0_i32_0 = arith.constant 0 : i32
    %c0_i32_1 = arith.constant 0 : i32
    return %c0_i32, %c0_i32_0 : i32, i32
  }
  func.func @transform_2(%arg0: i32) -> (i32, i32) {
    %c0_i32 = arith.constant 0 : i32
    %c0_i32_0 = arith.constant 0 : i32
    %c0_i32_1 = arith.constant 0 : i32
    return %c0_i32, %c0_i32_0 : i32, i32
  }
  func.func @transform_3(%arg0: i32) -> (i32, i32) {
    %c0_i32 = arith.constant 0 : i32
    %c0_i32_0 = arith.constant 0 : i32
    return %arg0, %c0_i32 : i32, i32
  }
}

</mosaic_0001>

<llo_original>
// kernel: tpu_custom_call.1
$region0: #{tpu_custom_call.1}
  #allocation0 [shape = 'u32[]', space=smem, size = 0x4, offset = 0x4, fixed_abs, tag = 'smem constant byte address 0x4 - core index']
  #allocation1 [shape = 'u32[144,128]{1,0:T(1,128)}', space=vmem, size = 0x12000, scoped, tag = 'internal scratch']
  %s0 = inlined_call_operand.hbm [shape: f32[16,32], index: 0, kind: input, shape index: {}]
  %s1 = inlined_call_operand.vmem [shape: f32[1,32], index: 1, kind: input, shape index: {}]
  %s2 = inlined_call_operand.vmem [shape: f32[1,32], index: 2, kind: input, shape index: {}]
  %s3 = inlined_call_operand.hbm [shape: f32[16,32], index: 3, kind: output, shape index: {}]
  %s4 = sld [smem:[#allocation0]]
  $region26: #{tpu_custom_call.1} parent=0
    _
  %s6 = ssub.s32 1, %s4
  %s7 = scalar_select 0, %s6, %s4
  $region1: #{tpu_custom_call.1} parent=0
    #allocation2 [shape = 'u8[8192]{0}', space=vmem, size = 0x2000, scoped, tag = 'input window, operand 0, single buffered']
    #allocation3 [shape = 's32[1]{0}', space=sflag, size = 0x4, scoped, tag = 'scoped memory for tpu_custom_call.1']
    #allocation4 [shape = 's32[1]{0}', space=sflag, size = 0x4, scoped, tag = 'scoped memory for tpu_custom_call.1']
    #allocation5 [shape = 'u8[8192]{0}', space=vmem, size = 0x2000, scoped, tag = 'output window, operand 0, single buffered']
    %8 = vsyncpa [#allocation3], 0
    %9 = vsyncpa [#allocation4], 0
    // Predicated region
    $region2: #{tpu_custom_call.1} parent=1 // pred_check
      _
    $region3: #{tpu_custom_call.1} parent=1 // pred_check_branch
      %11 = sbr.rel (0) target = $region5
    $region4: #{tpu_custom_call.1} parent=1 // pred_region
      %s13 = ssub.s32 256, 256
      %14 = vsyncadd [#allocation3], %s13
      %s15 = sshll.u32 [#allocation2], 4
      %s16 = int_to_ptr.vmem [resolvable:$true] %s15
      %21 = dma.hbm_to_vmem [thread:$0]  %s0, 256, %s16, [#allocation3], 128, 128, 8
    $region5: #{tpu_custom_call.1} parent=1 // pred_fallthru
      _
    // Predicated region
    $region6: #{tpu_custom_call.1} parent=1 // pred_check
      _
    $region7: #{tpu_custom_call.1} parent=1 // pred_check_branch
      %23 = sbr.rel (0) target = $region9
    $region8: #{tpu_custom_call.1} parent=1 // pred_region
      _
    $region9: #{tpu_custom_call.1} parent=1 // pred_fallthru
      _
    // Predicated region
    $region10: #{tpu_custom_call.1} parent=1 // pred_check
      _
    $region11: #{tpu_custom_call.1} parent=1 // pred_check_branch
      %25 = sbr.rel (0) target = $region13
    $region12: #{tpu_custom_call.1} parent=1 // pred_region
      _
    $region13: #{tpu_custom_call.1} parent=1 // pred_fallthru
      _
    // Predicated region
    $region14: #{tpu_custom_call.1} parent=1 // pred_check
      _
    $region15: #{tpu_custom_call.1} parent=1 // pred_check_branch
      %27 = sbr.rel (0) target = $region17
    $region16: #{tpu_custom_call.1} parent=1 // pred_region
      %28 = dma.done [#allocation3], 256
    $region17: #{tpu_custom_call.1} parent=1 // pred_fallthru
      _
    %v29 = vld [vmem:[#allocation2] sm:$0xff]
    %v30 = vld [vmem:[#allocation2 + $0x8] sm:$0xff]
    %vm31 = vcmask 261120
    %v32 = vsel %vm31, %v29, 0.0
    %33 = vadd.xlane.f32.xlu0 %v32
    %v34 = vpop.xlane.xlu0 %33
    %v35 = vsel %vm31, %v30, 0.0
    %36 = vadd.xlane.f32.xlu0 %v35
    %v37 = vpop.xlane.xlu0 %36
    %v38 = vrcp.pop 32.0
    %v39 = vmul.f32 %v34, %v38
    %v40 = vmul.f32 %v37, %v38
    %v41 = vsub.f32 %v29, %v39
    %v42 = vsub.f32 %v30, %v40
    %v43 = vmul.f32 %v41, %v41
    %v44 = vmul.f32 %v42, %v42
    %v45 = vsel %vm31, %v43, 0.0
    %46 = vadd.xlane.f32.xlu0 %v45
    %v47 = vpop.xlane.xlu0 %46
    %v48 = vsel %vm31, %v44, 0.0
    %49 = vadd.xlane.f32.xlu0 %v48
    %v50 = vpop.xlane.xlu0 %49
    %v51 = vmul.f32 %v47, %v38
    %v52 = vmul.f32 %v50, %v38
    %v53 = vld [vmem:[%s1] sm:$0x1]
    %v54 = vadd.f32 %v51, 1e-12
    %v55 = vadd.f32 %v52, 1e-12
    %v56 = vrsqrt.pop %v54
    %v57 = vrsqrt.pop %v55
    %v58 = vmul.f32 %v41, %v56
    %v59 = vmul.f32 %v42, %v57
    %v61 = vlaneseq
    %v62 = vshrl.u32 %v61, 7
    %v63 = vsub.s32 0, %v62
    %v64 = vrot.slane %v53, %v63
    %v66 = vmul.f32 %v64, %v58
    %v67 = vmul.f32 %v64, %v59
    %v68 = vld [vmem:[%s2] sm:$0x1]
    %v70 = vlaneseq
    %v71 = vshrl.u32 %v70, 7
    %v72 = vsub.s32 0, %v71
    %v73 = vrot.slane %v68, %v72
    %v75 = vadd.f32 %v66, %v73
    %v76 = vadd.f32 %v67, %v73
    %77 = vst.msk [vmem:[#allocation5] sm:$0xff] %vm31, %v75
    %78 = vst.msk [vmem:[#allocation5 + $0x8] sm:$0xff] %vm31, %v76
    // Predicated region
    $region18: #{tpu_custom_call.1} parent=1 // pred_check
      _
    $region19: #{tpu_custom_call.1} parent=1 // pred_check_branch
      %80 = sbr.rel (0) target = $region21
    $region20: #{tpu_custom_call.1} parent=1 // pred_region
      %s82 = ssub.s32 256, 256
      %83 = vsyncadd [#allocation4], %s82
      %s84 = sshll.u32 [#allocation5], 4
      %s85 = int_to_ptr.vmem [resolvable:$true] %s84
      %90 = dma.vmem_to_hbm [thread:$0]  %s85, 256, %s3, [#allocation4], 128, 128, 8
    $region21: #{tpu_custom_call.1} parent=1 // pred_fallthru
      _
    // Predicated region
    $region22: #{tpu_custom_call.1} parent=1 // pred_check
      _
    $region23: #{tpu_custom_call.1} parent=1 // pred_check_branch
      %92 = sbr.rel (0) target = $region25
    $region24: #{tpu_custom_call.1} parent=1 // pred_region
      %93 = dma.done [#allocation4], 256
    $region25: #{tpu_custom_call.1} parent=1 // pred_fallthru
      _
    %94 = vsyncpa [#allocation3], 1
    %95 = vsyncpa [#allocation4], 1

</llo_original>
